<compile_context>
chip_gen: v7x
topology: tpu7x:2x2x1
jax: 0.10.0
libtpu: 0.0.40
codegen_flags: <defaults>
</compile_context>

<pallas_src>
import jax
import jax.numpy as jnp
from jax.experimental import pallas as pl
from jax.experimental.pallas import tpu as pltpu


# ---------------------------------------------------------------------------
# Pallas kernel: identity (forward(t) == t)
# ---------------------------------------------------------------------------
def identity_kernel(x_ref, o_ref):
    # Straight VMEM copy of the whole (lane-dense) slab.
    o_ref[...] = x_ref[...]


def network_forward(x):
    """Reproduces Network.forward: returns the input unchanged.

    The NCHW tensor is presented to the kernel as a lane-dense 2-D view
    (N, C*H*W) so Mosaic emits unmasked, full-lane vector stores, then the
    original shape is restored in the wrapper (reshape is metadata-only).
    """
    n = x.shape[0]
    x2d = x.reshape(n, -1)  # (2, 784): last dim >= 128 lanes, lane-dense

    y2d = pl.pallas_call(
        identity_kernel,
        out_shape=jax.ShapeDtypeStruct(x2d.shape, x2d.dtype),
        in_specs=[pl.BlockSpec(memory_space=pltpu.MemorySpace.VMEM)],
        out_specs=pl.BlockSpec(memory_space=pltpu.MemorySpace.VMEM),
    )(x2d)

    return y2d.reshape(x.shape)


if __name__ == "__main__":
    key = jax.random.PRNGKey(0)

    # Input consistent with the module's conv1 (in_channels=1); MNIST-like:
    # batch=2, channels=1, spatial=28x28. The declared conv/fc layer shapes
    # would be consistent with this input if forward were ever completed.
    x = jax.random.normal(key, (2, 1, 28, 28), jnp.float32)

    y = network_forward(x)
    y = jax.block_until_ready(y)

    assert y.shape == x.shape and y.dtype == x.dtype
    assert bool(jnp.allclose(y, x))
    print("KERNEL_OK")
</pallas_src>

<mosaic_0001>
module attributes {stable_mosaic.version = 11 : i64} {
  func.func @identity_kernel(%arg0: memref<2x784xf32, #tpu.memory_space<vmem>>, %arg1: memref<2x784xf32, #tpu.memory_space<vmem>>) attributes {dimension_semantics = [], scalar_prefetch = 0 : i64, scratch_operands = 0 : i64, tpu.core_type = #tpu.core_type<tc>} {
    %c0 = arith.constant 0 : index
    %c0_0 = arith.constant 0 : index
    %0 = vector.load %arg0[%c0, %c0_0] : memref<2x784xf32, #tpu.memory_space<vmem>>, vector<2x784xf32>
    %c0_1 = arith.constant 0 : index
    %c0_2 = arith.constant 0 : index
    %1 = vector.load %arg1[%c0_1, %c0_2] : memref<2x784xf32, #tpu.memory_space<vmem>>, vector<2x784xf32>
    tpu.vector_store %arg1[%c0_1, %c0_2], %0 {strides = array<i32>} : memref<2x784xf32, #tpu.memory_space<vmem>>, vector<2x784xf32>,
    return
  }
}

</mosaic_0001>

<llo_original>
// kernel: tpu_custom_call.1
$region0: #{tpu_custom_call.1}
  #allocation0 [shape = 'u32[]', space=smem, size = 0x4, offset = 0x4, fixed_abs, tag = 'smem constant byte address 0x4 - core index']
  #allocation1 [shape = 'u32[144,128]{1,0:T(1,128)}', space=vmem, size = 0x12000, scoped, tag = 'internal scratch']
  %s0 = inlined_call_operand.hbm [shape: f32[2,784], index: 0, kind: input, shape index: {}]
  %s1 = inlined_call_operand.hbm [shape: f32[2,784], index: 1, kind: output, shape index: {}]
  %s2 = sld [smem:[#allocation0]]
  $region18: #{tpu_custom_call.1} parent=0
    _
  %s4 = ssub.s32 1, %s2
  %s5 = scalar_select 0, %s4, %s2
  $region1: #{tpu_custom_call.1} parent=0
    #allocation2 [shape = 'u8[7168]{0}', space=vmem, size = 0x1c00, scoped, tag = 'input window, operand 0, single buffered']
    #allocation3 [shape = 's32[1]{0}', space=sflag, size = 0x4, scoped, tag = 'scoped memory for tpu_custom_call.1']
    #allocation4 [shape = 's32[1]{0}', space=sflag, size = 0x4, scoped, tag = 'scoped memory for tpu_custom_call.1']
    #allocation5 [shape = 'u8[7168]{0}', space=vmem, size = 0x1c00, scoped, tag = 'output window, operand 0, single buffered']
    %6 = vsyncpa [#allocation3], 0
    %7 = vsyncpa [#allocation4], 0
    // Predicated region
    $region2: #{tpu_custom_call.1} parent=1 // pred_check
      _
    $region3: #{tpu_custom_call.1} parent=1 // pred_check_branch
      %9 = sbr.rel (0) target = $region5
    $region4: #{tpu_custom_call.1} parent=1 // pred_region
      %s11 = ssub.s32 224, 224
      %12 = vsyncadd [#allocation3], %s11
      %s14 = sshll.u32 [#allocation2], 4
      %s15 = int_to_ptr.vmem [resolvable:$true] %s14
      %17 = dma.hbm_to_vmem [thread:$0]  %s0, 224, %s15, [#allocation3]
    $region5: #{tpu_custom_call.1} parent=1 // pred_fallthru
      _
    // Predicated region
    $region6: #{tpu_custom_call.1} parent=1 // pred_check
      _
    $region7: #{tpu_custom_call.1} parent=1 // pred_check_branch
      %19 = sbr.rel (0) target = $region9
    $region8: #{tpu_custom_call.1} parent=1 // pred_region
      %20 = dma.done [#allocation3], 224
    $region9: #{tpu_custom_call.1} parent=1 // pred_fallthru
      _
    %v21 = vld [vmem:[#allocation2] sm:$0xff]
    %v22 = vld [vmem:[#allocation2 + $0x8] sm:$0x3f]
    %23 = vst [vmem:[#allocation5] sm:$0xff] %v21
    %vm24 = vcmask 1041408
    %vm25 = vcmask 1043458
    %vm26 = vmor %vm25, %vm24
    %vm27 = vcmask 128004
    %vm28 = vmor %vm27, %vm26
    %29 = vst.msk [vmem:[#allocation5 + $0x8] sm:$0x3f] %vm28, %v22
    // Predicated region
    $region10: #{tpu_custom_call.1} parent=1 // pred_check
      _
    $region11: #{tpu_custom_call.1} parent=1 // pred_check_branch
      %31 = sbr.rel (0) target = $region13
    $region12: #{tpu_custom_call.1} parent=1 // pred_region
      %s33 = ssub.s32 224, 224
      %34 = vsyncadd [#allocation4], %s33
      %s36 = sshll.u32 [#allocation5], 4
      %s37 = int_to_ptr.vmem [resolvable:$true] %s36
      %39 = dma.vmem_to_hbm [thread:$0]  %s37, 224, %s1, [#allocation4]
    $region13: #{tpu_custom_call.1} parent=1 // pred_fallthru
      _
    // Predicated region
    $region14: #{tpu_custom_call.1} parent=1 // pred_check
      _
    $region15: #{tpu_custom_call.1} parent=1 // pred_check_branch
      %41 = sbr.rel (0) target = $region17
    $region16: #{tpu_custom_call.1} parent=1 // pred_region
      %42 = dma.done [#allocation4], 224
    $region17: #{tpu_custom_call.1} parent=1 // pred_fallthru
      _
    %43 = vsyncpa [#allocation3], 1
    %44 = vsyncpa [#allocation4], 1

</llo_original>
